<compile_context>
chip_gen: v7x
topology: tpu7x:2x2x1
jax: 0.10.0
libtpu: 0.0.40
codegen_flags: <defaults>
</compile_context>

<pallas_src>
import jax
import jax.numpy as jnp
from jax import lax
from jax.experimental import pallas as pl
from jax.experimental.pallas import tpu as pltpu


_CompilerParams = getattr(pltpu, "CompilerParams", None)
if _CompilerParams is None:  # very old jax fallback
    _CompilerParams = getattr(pltpu, "TPUCompilerParams")


# --------------------------------------------------------------------------
# helpers
# --------------------------------------------------------------------------
def _round_up(x, m):
    return -(-x // m) * m


def _cdiv(a, b):
    return -(-a // b)


def _num_tensorcores():
    """2 only on v7x (2 TC/chip); v5e/v6e are single-TensorCore."""
    try:
        kind = jax.devices()[0].device_kind.lower()
    except Exception:
        return 1
    if "v7" in kind or "7x" in kind:
        return 2
    return 1


def _vmem_cap_bytes():
    try:
        info = pltpu.get_tpu_info()
        cap = getattr(info, "vmem_capacity_bytes", None)
        if cap:
            return int(cap)
    except Exception:
        pass
    return 64 << 20  # conservative: v7x physical VMEM


def _vmem_limit(byte_estimate):
    """Requested scoped-VMEM limit: estimate + margin, capped at 85% physical."""
    ceiling = int(_vmem_cap_bytes() * 85 // 100)
    want = int(byte_estimate) + int(byte_estimate) // 4 + (4 << 20)
    return int(min(max(want, 16 << 20), ceiling))


def _pick_row_tile(n_rows, d, itemsize, target_bytes=4 << 20):
    """Row-chunk size targeting ~4 MiB per x tile, 256-aligned, in [256, 8192]."""
    per_row = max(d * itemsize, 1)
    r = max(target_bytes // per_row, 256)
    r = min((int(r) // 256) * 256, 8192)
    if n_rows <= r:
        return n_rows  # single block == full dim; (8,128) rule waived
    return r


# --------------------------------------------------------------------------
# Kernel 1: covariance accumulation (training mode).
#   xTx[:, jb]  += sum over row chunks of  x_chunk^T x_chunk[:, jb]
#   xTx_avg     += sum over rows of x
# Grid: (n_split, n_col_blocks, chunks_per_split); the last axis is the
# "arbitrary" reduction, the first two are "parallel".
# --------------------------------------------------------------------------
def _make_cov_kernel(r, cps, n_total, needs_mask, two_operands):
    def kernel(*refs):
        if two_operands:
            xl_ref, xr_ref, xtx_ref, avg_ref = refs
        else:
            xl_ref, xtx_ref, avg_ref = refs
            xr_ref = None

        k = pl.program_id(2)

        @pl.when(k == 0)
        def _():
            xtx_ref[...] = jnp.zeros_like(xtx_ref)
            avg_ref[...] = jnp.zeros_like(avg_ref)

        s_l = xl_ref[...]
        s_r = xr_ref[...] if two_operands else None

        if needs_mask:
            # Tail / ghost chunks: zero out rows past the true row count.
            chunk = pl.program_id(0) * cps + k          # logical chunk index
            rows_valid = n_total - chunk * r             # may be <= 0 (ghost)
            row_ok = lax.broadcasted_iota(jnp.int32, (r, 1), 0) < rows_valid
            s_l = jnp.where(row_ok, s_l, 0)
            if two_operands:
                s_r = jnp.where(row_ok, s_r, 0)
        if not two_operands:
            s_r = s_l

        # Contract over the row axis of both operands directly (no transpose).
        xtx_ref[...] += lax.dot_general(
            s_l, s_r,
            dimension_numbers=(((0,), (0,)), ((), ())),
            preferred_element_type=jnp.float32)
        avg_ref[...] += jnp.sum(s_l.astype(jnp.float32), axis=0, keepdims=True)

    return kernel


def cov_update(x, *, force_row_tile=None, force_col_block=None,
               force_num_splits=None):
    """x: (B, T, D) -> (xTx_delta (D, D), xTx_avg_delta (D,))."""
    B, T, D = x.shape
    n = B * T
    xf = x.reshape(n, D)
    if xf.dtype not in (jnp.float32, jnp.bfloat16):
        xf = xf.astype(jnp.float32)
    itemsize = xf.dtype.itemsize

    r = force_row_tile if force_row_tile is not None else _pick_row_tile(n, D, itemsize)
    n_chunks = _cdiv(n, r)

    # Column-tile the (D, D) accumulator when it would not fit the VMEM budget
    # (double-buffered). Blocks are 128-lane multiples; edge blocks are fine.
    acc_budget = 16 << 20
    if force_col_block is not None:
        cb = force_col_block
    elif 2 * D * D * 4 > acc_budget:
        cb = max(128, (acc_budget // (2 * D * 4)) // 128 * 128)
        cb = min(cb, D)
    else:
        cb = D
    n_cb = _cdiv(D, cb)
    two_ops = n_cb > 1

    # Row-reduction split across TensorCores: only pays on v7x (2 TCs).
    if force_num_splits is not None:
        n_split = max(1, min(force_num_splits, n_chunks))
    elif two_ops:
        n_split = 1            # column axis already provides core parallelism
    else:
        n_split = _num_tensorcores() if n_chunks >= 2 else 1
    cps = _cdiv(n_chunks, n_split)

    needs_mask = (n % r != 0) or (n_split * cps != n_chunks)
    last_chunk = n_chunks - 1
    if n_split * cps == n_chunks:
        x_lhs_map = lambda c, jb, k: (c * cps + k, 0)
        x_rhs_map = lambda c, jb, k: (c * cps + k, jb)
    else:
        # Ghost chunks: clamp the block index (data is masked out in-kernel).
        x_lhs_map = lambda c, jb, k: (jnp.minimum(c * cps + k, last_chunk), 0)
        x_rhs_map = lambda c, jb, k: (jnp.minimum(c * cps + k, last_chunk), jb)

    in_specs = [pl.BlockSpec((r, D), x_lhs_map)]
    args = [xf]
    if two_ops:
        in_specs.append(pl.BlockSpec((r, cb), x_rhs_map))
        args.append(xf)

    out_specs = (
        pl.BlockSpec((None, D, cb), lambda c, jb, k: (c, 0, jb)),
        pl.BlockSpec((None, 1, D), lambda c, jb, k: (c * n_cb + jb, 0, 0)),
    )
    out_shape = (
        jax.ShapeDtypeStruct((n_split, D, D), jnp.float32),
        jax.ShapeDtypeStruct((n_split * n_cb, 1, D), jnp.float32),
    )

    est = (2 * r * D * itemsize
           + (2 * r * cb * itemsize if two_ops else 0)
           + 2 * D * cb * 4                       # double-buffered accumulator
           + 2 * 8 * _round_up(D, 128) * 4)       # avg block (padded)

    kernel = _make_cov_kernel(r, cps, n, needs_mask, two_ops)
    xtx_p, avg_p = pl.pallas_call(
        kernel,
        out_shape=out_shape,
        grid_spec=pltpu.PrefetchScalarGridSpec(
            num_scalar_prefetch=0,
            grid=(n_split, n_cb, cps),
            in_specs=in_specs,
            out_specs=out_specs,
        ),
        compiler_params=_CompilerParams(
            dimension_semantics=("parallel", "parallel", "arbitrary"),
            vmem_limit_bytes=_vmem_limit(est)),
    )(*args)

    xtx = jnp.sum(xtx_p, axis=0) if n_split > 1 else xtx_p[0]
    avg_slots = avg_p.reshape(n_split, n_cb, D)[:, 0, :]   # jb copies are identical
    avg = jnp.sum(avg_slots, axis=0) if n_split > 1 else avg_slots[0]
    return xtx, avg


# --------------------------------------------------------------------------
# Kernel 2: PCA projection (eval mode).
#   out = x @ v - (avg @ v)    -- mean folded into a small output-side bias.
# --------------------------------------------------------------------------
def _pca_kernel(x_ref, v_ref, bias_ref, o_ref):
    o_ref[...] = (jnp.dot(x_ref[...], v_ref[...],
                          preferred_element_type=jnp.float32)
                  - bias_ref[...]).astype(o_ref.dtype)


def pca_execute(x, avg, v, *, force_row_tile=None):
    """x: (B, T, D), avg: (1, D), v: (D, O) -> (B, T, O) float32."""
    B, T, D = x.shape
    O = v.shape[1]
    n = B * T
    xf = x.reshape(n, D)
    if xf.dtype not in (jnp.float32, jnp.bfloat16):
        xf = xf.astype(jnp.float32)
    itemsize = xf.dtype.itemsize

    r = force_row_tile if force_row_tile is not None else _pick_row_tile(n, D, itemsize)
    n_blocks = _cdiv(n, r)

    vf = v.astype(jnp.float32)
    # Lane-dense output only when it pays; small O keeps masked (r, O) stores.
    if O % 128 == 0 or O < 64:
        o_dim = O
    else:
        o_dim = _round_up(O, 128)
        vf = jnp.pad(vf, ((0, 0), (0, o_dim - O)))
    bias = jnp.dot(avg.astype(jnp.float32).reshape(1, D), vf)   # (1, o_dim)

    est = (2 * r * D * itemsize + 2 * r * o_dim * 4
           + 2 * D * o_dim * 4 + 2 * 8 * _round_up(o_dim, 128) * 4)

    out = pl.pallas_call(
        _pca_kernel,
        out_shape=jax.ShapeDtypeStruct((n, o_dim), jnp.float32),
        grid_spec=pltpu.PrefetchScalarGridSpec(
            num_scalar_prefetch=0,
            grid=(n_blocks,),
            in_specs=[
                pl.BlockSpec((r, D), lambda i: (i, 0)),
                pl.BlockSpec((D, o_dim), lambda i: (0, 0)),
                pl.BlockSpec((1, o_dim), lambda i: (0, 0)),
            ],
            out_specs=pl.BlockSpec((r, o_dim), lambda i: (i, 0)),
        ),
        compiler_params=_CompilerParams(
            dimension_semantics=("parallel",),
            vmem_limit_bytes=_vmem_limit(est)),
    )(xf, vf, bias)

    if o_dim != O:
        out = out[:, :O]
    return out.reshape(B, T, O)


# --------------------------------------------------------------------------
# Thin stateful wrapper mirroring PCACell's forward / finalize.
# --------------------------------------------------------------------------
class PCACellPallas:
    def __init__(self, input_dim, output_dim):
        self.input_dim = input_dim
        self.output_dim = output_dim
        self.xTx = jnp.zeros((input_dim, input_dim), jnp.float32)
        self.xTx_avg = jnp.zeros((input_dim,), jnp.float32)
        self.tlen = 0
        self.avg = None
        self.v = None
        self.d = None
        self.total_variance = None
        self.explained_variance = None

    def forward(self, x, training):
        B, T, _ = x.shape
        if training:
            dxtx, davg = cov_update(x)
            self.xTx = self.xTx + dxtx
            self.xTx_avg = self.xTx_avg + davg
            self.tlen += B * T
            # PyTorch forward returns the untouched zero-initialized outputs.
            return jnp.zeros((B, T, self.output_dim), jnp.float32)
        else:
            if self.avg is None or self.v is None:
                raise RuntimeError("finalize() must be called before eval forward")
            return pca_execute(x, self.avg, self.v)

    def finalize(self):
        # TODO(synk): the symmetric eigendecomposition has no Pallas
        # equivalent; it stays in jnp.linalg.eigh (tiny D x D problem).
        if self.tlen < self.input_dim:
            raise Exception("Not enough observations")
        tlen = float(self.tlen)
        xTx = self.xTx / (tlen - 1.0)
        avg_mtx = jnp.outer(self.xTx_avg, self.xTx_avg) / (tlen * (tlen - 1.0))
        xTx = xTx - avg_mtx
        avg = self.xTx_avg / tlen
        self.avg = avg[None, :]                       # (1, D)
        total_var = jnp.sum(jnp.diag(xTx))
        d, v = jnp.linalg.eigh(xTx)                   # ascending, like symeig
        d = d[::-1]
        v = v[:, ::-1]
        self.explained_variance = jnp.sum(d) / total_var
        self.d = d[: self.output_dim]
        self.v = v[:, : self.output_dim]              # (D, O)
        self.total_variance = total_var


if __name__ == "__main__":
    key = jax.random.PRNGKey(0)
    B, T, D, O = 2, 16, 32, 16                        # input_dim=32, output_dim=16
    x = jax.random.normal(key, (B, T, D), dtype=jnp.float32)

    cell = PCACellPallas(D, O)

    # --- training mode forward: accumulates covariance, returns zeros ------
    out_train = cell.forward(x, training=True)
    jax.block_until_ready(out_train)
    assert out_train.shape == (B, T, O)

    xf = x.reshape(B * T, D)
    assert jnp.allclose(cell.xTx, xf.T @ xf, atol=1e-3, rtol=1e-4)
    assert jnp.allclose(cell.xTx_avg, jnp.sum(xf, axis=0), atol=1e-3, rtol=1e-4)

    # --- finalize (eigendecomposition, plain JAX glue) ----------------------
    cell.finalize()

    # --- eval mode forward: project onto principal components --------------
    out = cell.forward(x, training=False)
    jax.block_until_ready(out)
    ref_out = (x - cell.avg[None, :, :]) @ cell.v
    assert out.shape == (B, T, O)
    assert jnp.allclose(out, ref_out, atol=1e-3, rtol=1e-4)

    # --- partial tail chunk: in-kernel row masking, no wrapper pad ---------
    x2 = jax.random.normal(jax.random.PRNGKey(1), (3, 10, D), jnp.float32)  # 30 rows
    dxtx2, davg2 = cov_update(x2, force_row_tile=16)        # 2 chunks, tail masked
    xf2 = x2.reshape(-1, D)
    assert jnp.allclose(dxtx2, xf2.T @ xf2, atol=1e-3, rtol=1e-4)
    assert jnp.allclose(davg2, jnp.sum(xf2, axis=0), atol=1e-3, rtol=1e-4)
    out2 = pca_execute(x2, cell.avg, cell.v, force_row_tile=16)  # OOB edge stores dropped
    ref_out2 = (x2 - cell.avg[None, :, :]) @ cell.v
    assert jnp.allclose(out2, ref_out2, atol=1e-3, rtol=1e-4)

    # --- ghost-chunk path: 2-way split with clamped index_map + masking ----
    x3 = jax.random.normal(jax.random.PRNGKey(2), (4, 10, D), jnp.float32)  # 40 rows
    dxtx3, davg3 = cov_update(x3, force_row_tile=16, force_num_splits=2)    # 3 chunks / 2 splits
    xf3 = x3.reshape(-1, D)
    assert jnp.allclose(dxtx3, xf3.T @ xf3, atol=1e-3, rtol=1e-4)
    assert jnp.allclose(davg3, jnp.sum(xf3, axis=0), atol=1e-3, rtol=1e-4)

    # --- column-tiled accumulator path (large-D / v7x robustness) ----------
    Db = 256
    x4 = jax.random.normal(jax.random.PRNGKey(3), (2, 32, Db), jnp.float32)  # 64 rows
    dxtx4, davg4 = cov_update(x4, force_col_block=128)       # two column blocks
    xf4 = x4.reshape(-1, Db)
    assert jnp.allclose(dxtx4, xf4.T @ xf4, atol=1e-2, rtol=1e-4)
    assert jnp.allclose(davg4, jnp.sum(xf4, axis=0), atol=1e-3, rtol=1e-4)

    # --- bf16 passthrough (no wrapper astype/HBM copy) ----------------------
    xb = x.astype(jnp.bfloat16)
    dxtxb, davgb = cov_update(xb)
    xbf = xb.astype(jnp.float32).reshape(B * T, D)
    assert jnp.allclose(dxtxb, xbf.T @ xbf, atol=2e-2, rtol=1e-2)
    assert jnp.allclose(davgb, jnp.sum(xbf, axis=0), atol=2e-2, rtol=1e-2)

    print("KERNEL_OK")
</pallas_src>

<mosaic_0001>
module attributes {stable_mosaic.version = 11 : i64} {
  func.func @kernel(%arg0: i32, %arg1: i32, %arg2: i32, %arg3: memref<32x32xf32, #tpu.memory_space<vmem>>, %arg4: memref<1x32x32xf32, #tpu.memory_space<vmem>>, %arg5: memref<1x1x32xf32, #tpu.memory_space<vmem>>) attributes {dimension_semantics = [#tpu.dimension_semantics<parallel>, #tpu.dimension_semantics<parallel>, #tpu.dimension_semantics<arbitrary>], iteration_bounds = array<i64: 1, 1, 1>, scalar_prefetch = 0 : i64, scratch_operands = 0 : i64, tpu.core_type = #tpu.core_type<tc>, window_params = [{transform_indices = @transform_0, window_bounds = array<i64: 32, 32>}, {transform_indices = @transform_1, window_bounds = array<i64: 1, 32, 32>}, {transform_indices = @transform_2, window_bounds = array<i64: 1, 1, 32>}]} {
    %c0_i32 = arith.constant 0 : i32
    %0 = arith.cmpi eq, %arg2, %c0_i32 : i32
    %1 = arith.extui %0 : i1 to i32
    %c0_i32_0 = arith.constant 0 : i32
    %2 = arith.cmpi ne, %1, %c0_i32_0 : i32
    scf.if %2 {
      %cst_15 = arith.constant 0.000000e+00 : f32
      %19 = vector.broadcast %cst_15 : f32 to vector<32x32xf32>
      %c0_16 = arith.constant 0 : index
      %c0_17 = arith.constant 0 : index
      %c0_18 = arith.constant 0 : index
      %20 = vector.load %arg4[%c0_16, %c0_17, %c0_18] : memref<1x32x32xf32, #tpu.memory_space<vmem>>, vector<1x32x32xf32>
      %21 = vector.shape_cast %20 : vector<1x32x32xf32> to vector<32x32xf32>
      %22 = vector.shape_cast %19 : vector<32x32xf32> to vector<1x32x32xf32>
      tpu.vector_store %arg4[%c0_16, %c0_17, %c0_18], %22 {strides = array<i32>} : memref<1x32x32xf32, #tpu.memory_space<vmem>>, vector<1x32x32xf32>,
      %cst_19 = arith.constant 0.000000e+00 : f32
      %23 = vector.broadcast %cst_19 : f32 to vector<1x32xf32>
      %c0_20 = arith.constant 0 : index
      %c0_21 = arith.constant 0 : index
      %c0_22 = arith.constant 0 : index
      %24 = vector.load %arg5[%c0_20, %c0_21, %c0_22] : memref<1x1x32xf32, #tpu.memory_space<vmem>>, vector<1x1x32xf32>
      %25 = vector.shape_cast %24 : vector<1x1x32xf32> to vector<1x32xf32>
      %26 = vector.shape_cast %23 : vector<1x32xf32> to vector<1x1x32xf32>
      tpu.vector_store %arg5[%c0_20, %c0_21, %c0_22], %26 {strides = array<i32>} : memref<1x1x32xf32, #tpu.memory_space<vmem>>, vector<1x1x32xf32>,
    } else {
    }
    %c0 = arith.constant 0 : index
    %c0_1 = arith.constant 0 : index
    %3 = vector.load %arg3[%c0, %c0_1] : memref<32x32xf32, #tpu.memory_space<vmem>>, vector<32x32xf32>
    %c0_2 = arith.constant 0 : index
    %c0_3 = arith.constant 0 : index
    %c0_4 = arith.constant 0 : index
    %4 = vector.load %arg4[%c0_2, %c0_3, %c0_4] : memref<1x32x32xf32, #tpu.memory_space<vmem>>, vector<1x32x32xf32>
    %5 = vector.shape_cast %4 : vector<1x32x32xf32> to vector<32x32xf32>
    %cst = arith.constant dense<0.000000e+00> : vector<32x32xf32>
    %6 = tpu.matmul %3, %3, %cst {dimension_numbers = #tpu.dot_dimension_numbers<[0], [0], [1], [1], [0, 1, 1, 1], [], []>} : vector<32x32xf32>, vector<32x32xf32>, vector<32x32xf32> -> vector<32x32xf32>
    %7 = arith.addf %5, %6 : vector<32x32xf32>
    %c0_5 = arith.constant 0 : index
    %c0_6 = arith.constant 0 : index
    %c0_7 = arith.constant 0 : index
    %8 = vector.load %arg4[%c0_5, %c0_6, %c0_7] : memref<1x32x32xf32, #tpu.memory_space<vmem>>, vector<1x32x32xf32>
    %9 = vector.shape_cast %8 : vector<1x32x32xf32> to vector<32x32xf32>
    %10 = vector.shape_cast %7 : vector<32x32xf32> to vector<1x32x32xf32>
    tpu.vector_store %arg4[%c0_5, %c0_6, %c0_7], %10 {strides = array<i32>} : memref<1x32x32xf32, #tpu.memory_space<vmem>>, vector<1x32x32xf32>,
    %c0_8 = arith.constant 0 : index
    %c0_9 = arith.constant 0 : index
    %c0_10 = arith.constant 0 : index
    %11 = vector.load %arg5[%c0_8, %c0_9, %c0_10] : memref<1x1x32xf32, #tpu.memory_space<vmem>>, vector<1x1x32xf32>
    %12 = vector.shape_cast %11 : vector<1x1x32xf32> to vector<1x32xf32>
    %cst_11 = arith.constant dense<0.000000e+00> : vector<32xf32>
    %13 = vector.multi_reduction <add>, %3, %cst_11 [0] : vector<32x32xf32> to vector<32xf32>
    %14 = vector.shape_cast %13 : vector<32xf32> to vector<1x32xf32>
    %15 = arith.addf %12, %14 : vector<1x32xf32>
    %c0_12 = arith.constant 0 : index
    %c0_13 = arith.constant 0 : index
    %c0_14 = arith.constant 0 : index
    %16 = vector.load %arg5[%c0_12, %c0_13, %c0_14] : memref<1x1x32xf32, #tpu.memory_space<vmem>>, vector<1x1x32xf32>
    %17 = vector.shape_cast %16 : vector<1x1x32xf32> to vector<1x32xf32>
    %18 = vector.shape_cast %15 : vector<1x32xf32> to vector<1x1x32xf32>
    tpu.vector_store %arg5[%c0_12, %c0_13, %c0_14], %18 {strides = array<i32>} : memref<1x1x32xf32, #tpu.memory_space<vmem>>, vector<1x1x32xf32>,
    return
  }
  func.func @transform_0(%arg0: i32, %arg1: i32, %arg2: i32) -> (i32, i32) {
    %c1_i32 = arith.constant 1 : i32
    %0 = arith.muli %arg0, %c1_i32 : i32
    %1 = arith.addi %0, %arg2 : i32
    %c0_i32 = arith.constant 0 : i32
    %c0_i32_0 = arith.constant 0 : i32
    return %1, %c0_i32 : i32, i32
  }
  func.func @transform_1(%arg0: i32, %arg1: i32, %arg2: i32) -> (i32, i32, i32) {
    %c0_i32 = arith.constant 0 : i32
    %c0_i32_0 = arith.constant 0 : i32
    return %arg0, %c0_i32, %arg1 : i32, i32, i32
  }
  func.func @transform_2(%arg0: i32, %arg1: i32, %arg2: i32) -> (i32, i32, i32) {
    %c1_i32 = arith.constant 1 : i32
    %0 = arith.muli %arg0, %c1_i32 : i32
    %1 = arith.addi %0, %arg1 : i32
    %c0_i32 = arith.constant 0 : i32
    %c0_i32_0 = arith.constant 0 : i32
    %c0_i32_1 = arith.constant 0 : i32
    return %1, %c0_i32, %c0_i32_0 : i32, i32, i32
  }
}

</mosaic_0001>

<llo_original>
// kernel: tpu_custom_call.1
$region0: #{tpu_custom_call.1}
  #allocation0 [shape = 'u32[]', space=smem, size = 0x4, offset = 0x4, fixed_abs, tag = 'smem constant byte address 0x4 - core index']
  #allocation1 [shape = 'u32[144,128]{1,0:T(1,128)}', space=vmem, size = 0x12000, scoped, tag = 'internal scratch']
  %s0 = inlined_call_operand.hbm [shape: f32[32,32], index: 0, kind: input, shape index: {}]
  %s1 = inlined_call_operand.hbm [shape: f32[1,32,32], index: 1, kind: output, shape index: {0}]
  %s2 = inlined_call_operand.hbm [shape: f32[1,1,32], index: 2, kind: output, shape index: {1}]
  %3 = xla_tuple %s1, %s2
  %s4 = sld [smem:[#allocation0]]
  $region30: #{tpu_custom_call.1} parent=0
    _
  %s6 = ssub.s32 1, %s4
  %s7 = scalar_select 0, %s6, %s4
  $region1: #{tpu_custom_call.1} parent=0
    #allocation2 [shape = 'u8[16384]{0}', space=vmem, size = 0x4000, scoped, tag = 'input window, operand 0, single buffered']
    #allocation3 [shape = 's32[1]{0}', space=sflag, size = 0x4, scoped, tag = 'scoped memory for tpu_custom_call.1']
    #allocation4 [shape = 's32[1]{0}', space=sflag, size = 0x4, scoped, tag = 'scoped memory for tpu_custom_call.1']
    #allocation5 [shape = 'u8[16384]{0}', space=vmem, size = 0x4000, scoped, tag = 'output window, operand 0, single buffered']
    #allocation6 [shape = 'u8[512]{0}', space=vmem, size = 0x400, scoped, tag = 'output window, operand 1, single buffered']
    #allocation7 [shape = 's32[1]{0}', space=sflag, size = 0x4, scoped, tag = 'scoped memory for tpu_custom_call.1']
    %8 = vsyncpa [#allocation3], 0
    %9 = vsyncpa [#allocation4], 0
    %10 = vsyncpa [#allocation7], 0
    // Predicated region
    $region2: #{tpu_custom_call.1} parent=1 // pred_check
      _
    $region3: #{tpu_custom_call.1} parent=1 // pred_check_branch
      %12 = sbr.rel (0) target = $region5
    $region4: #{tpu_custom_call.1} parent=1 // pred_region
      %s13 = sadd.s32 0, 0
      %s14 = smul.u32 4, %s13
      %s16 = ssub.s32 512, 512
      %17 = vsyncadd [#allocation3], %s16
      %s18 = smul.addr %s14, 128
      %s19 = scalar_lea.hbm %s0, %s18
      %s20 = sshll.u32 [#allocation2], 4
      %s21 = int_to_ptr.vmem [resolvable:$true] %s20
      %26 = dma.hbm_to_vmem [thread:$0]  %s19, 512, %s21, [#allocation3], 128, 128, 8
    $region5: #{tpu_custom_call.1} parent=1 // pred_fallthru
      _
    // Predicated region
    $region6: #{tpu_custom_call.1} parent=1 // pred_check
      _
    $region7: #{tpu_custom_call.1} parent=1 // pred_check_branch
      %28 = sbr.rel (0) target = $region9
    $region8: #{tpu_custom_call.1} parent=1 // pred_region
      %29 = dma.done [#allocation3], 512
    $region9: #{tpu_custom_call.1} parent=1 // pred_fallthru
      _
    %s30 = sadd.s32 0, 0
    %s31 = smul.u32 4, %s30
    %s32 = sadd.s32 0, 0
    %p33 = scmp.eq.s32.totalorder 0, 0
    // Predicated region
    $region10: #{tpu_custom_call.1} parent=1 // pred_check
      %p34 = pneg %p33
    $region11: #{tpu_custom_call.1} parent=1 // pred_check_branch
      %36 = sbr.rel (%p34) target = $region13
    $region12: #{tpu_custom_call.1} parent=1 // pred_region
      %vm37 = vcmask 261120
      %38 = vst.msk [vmem:[#allocation5] sm:$0xff] %vm37, 0.0
      %39 = vst.msk [vmem:[#allocation5 + $0x8] sm:$0xff] %vm37, 0.0
      %40 = vst.msk [vmem:[#allocation5 + $0x10] sm:$0xff] %vm37, 0.0
      %41 = vst.msk [vmem:[#allocation5 + $0x18] sm:$0xff] %vm37, 0.0
      %vm42 = vcmask 253952
      %43 = vst.msk [vmem:[#allocation6] sm:$0x1] %vm42, 0.0
    $region13: #{tpu_custom_call.1} parent=1 // pred_fallthru
      _
    %v44 = vld [vmem:[#allocation2] sm:$0xff]
    %v45 = vld [vmem:[#allocation2 + $0x8] sm:$0xff]
    %v46 = vld [vmem:[#allocation2 + $0x10] sm:$0xff]
    %v47 = vld [vmem:[#allocation2 + $0x18] sm:$0xff]
    %v48 = vld [vmem:[#allocation5] sm:$0xff]
    %v49 = vld [vmem:[#allocation5 + $0x8] sm:$0xff]
    %v50 = vld [vmem:[#allocation5 + $0x10] sm:$0xff]
    %v51 = vld [vmem:[#allocation5 + $0x18] sm:$0xff]
    %52 = vxpose.xlu0.b32.start [1/16] %v44, 128
    %53 = vxpose.xlu0.b32.cont [2/16] %v45, 128
    %54 = vxpose.xlu0.b32.cont [3/16] %v46, 128
    %55 = vxpose.xlu0.b32.cont [4/16] %v47, 128
    %56 = vxpose.xlu0.b32.cont [5/16] 0.0, 128
    %57 = vxpose.xlu0.b32.cont [6/16] 0.0, 128
    %58 = vxpose.xlu0.b32.cont [7/16] 0.0, 128
    %59 = vxpose.xlu0.b32.cont [8/16] 0.0, 128
    %60 = vxpose.xlu0.b32.cont [9/16] 0.0, 128
    %61 = vxpose.xlu0.b32.cont [10/16] 0.0, 128
    %62 = vxpose.xlu0.b32.cont [11/16] 0.0, 128
    %63 = vxpose.xlu0.b32.cont [12/16] 0.0, 128
    %64 = vxpose.xlu0.b32.cont [13/16] 0.0, 128
    %65 = vxpose.xlu0.b32.cont [14/16] 0.0, 128
    %66 = vxpose.xlu0.b32.cont [15/16] 0.0, 128
    %67 = vxpose.xlu0.b32.end [16/16] 0.0, 128
    %v68 = vpop.trf.xlu0
    %v69 = vpop.trf.xlu0
    %v70 = vpop.trf.xlu0
    %v71 = vpop.trf.xlu0
    %v72 = vpop.trf.xlu0
    %v73 = vpop.trf.xlu0
    %v74 = vpop.trf.xlu0
    %v75 = vpop.trf.xlu0
    %v76 = vpop.trf.xlu0
    %v77 = vpop.trf.xlu0
    %v78 = vpop.trf.xlu0
    %v79 = vpop.trf.xlu0
    %v80 = vpop.trf.xlu0
    %v81 = vpop.trf.xlu0
    %v82 = vpop.trf.xlu0
    %v83 = vpop.trf.xlu0
    %vm84 = vcmask 261120
    %v86 = vsel %vm84, %v68, 0
    %v89 = vsel %vm84, %v69, 0
    %v92 = vsel %vm84, %v70, 0
    %v95 = vsel %vm84, %v71, 0
    %97 = vmatprep.subr.mxu0 0.0
    %98 = vmatpush1.msra.mxu0 %v44
    %99 = vmatprep.subr.mxu0 0.0
    %100 = vmatpush1.msra.mxu0 %v45
    %101 = vmatprep.subr.mxu0 0.0
    %102 = vmatpush1.msra.mxu0 %v46
    %103 = vmatprep.subr.mxu0 0.0
    %104 = vmatpush1.msra.mxu0 %v47
    %105 = vmatprep.subr.mxu0 0.0
    %106 = vmatpush1.msra.mxu0 0.0
    %107 = vmatprep.subr.mxu0 0.0
    %108 = vmatpush1.msra.mxu0 0.0
    %109 = vmatprep.subr.mxu0 0.0
    %110 = vmatpush1.msra.mxu0 0.0
    %111 = vmatprep.subr.mxu0 0.0
    %112 = vmatpush1.msra.mxu0 0.0
    %113 = vmatprep.subr.mxu0 0.0
    %114 = vmatpush1.msra.mxu0 0.0
    %115 = vmatprep.subr.mxu0 0.0
    %116 = vmatpush1.msra.mxu0 0.0
    %117 = vmatprep.subr.mxu0 0.0
    %118 = vmatpush1.msra.mxu0 0.0
    %119 = vmatprep.subr.mxu0 0.0
    %120 = vmatpush1.msra.mxu0 0.0
    %121 = vmatprep.subr.mxu0 0.0
    %122 = vmatpush1.msra.mxu0 0.0
    %123 = vmatprep.subr.mxu0 0.0
    %124 = vmatpush1.msra.mxu0 0.0
    %125 = vmatprep.subr.mxu0 0.0
    %126 = vmatpush1.msra.mxu0 0.0
    %127 = vmatprep.subr.mxu0 0.0
    %128 = vmatpush1.msra.mxu0 0.0
    %129 = vmatprep.subr.mxu0 0.0
    %130 = vmatpush1.msra.mxu0 0.0
    %131 = vmatprep.subr.mxu0 0.0
    %132 = vmatpush1.msra.mxu0 0.0
    %133 = vmatprep.subr.mxu0 0.0
    %134 = vmatpush1.msra.mxu0 0.0
    %135 = vmatprep.subr.mxu0 0.0
    %136 = vmatpush1.msra.mxu0 0.0
    %137 = vmatprep.subr.mxu0 0.0
    %138 = vmatpush1.msra.mxu0 0.0
    %139 = vmatprep.subr.mxu0 0.0
    %140 = vmatpush1.msra.mxu0 0.0
    %141 = vmatprep.subr.mxu0 0.0
    %142 = vmatpush1.msra.mxu0 0.0
    %143 = vmatprep.subr.mxu0 0.0
    %144 = vmatpush1.msra.mxu0 0.0
    %145 = vmatprep.subr.mxu0 0.0
    %146 = vmatpush1.msra.mxu0 0.0
    %147 = vmatprep.subr.mxu0 0.0
    %148 = vmatpush1.msra.mxu0 0.0
    %149 = vmatprep.subr.mxu0 0.0
    %150 = vmatpush1.msra.mxu0 0.0
    %151 = vmatprep.subr.mxu0 0.0
    %152 = vmatpush1.msra.mxu0 0.0
    %153 = vmatprep.subr.mxu0 0.0
    %154 = vmatpush1.msra.mxu0 0.0
    %155 = vmatprep.subr.mxu0 0.0
    %156 = vmatpush1.msra.mxu0 0.0
    %157 = vmatprep.subr.mxu0 0.0
    %158 = vmatpush1.msra.mxu0 0.0
    %159 = vmatprep.subr.mxu0 0.0
    %160 = vmatpush1.msra.mxu0 0.0
    %161 = vmatprep.mubr.f32.mxu0 0.0
    %162 = vmatmul.mubr.f32.gmra.mrb[0].mxu0 %v86
    %v163 = vpop.f32.mrb[0].mxu0
    %v164 = vadd.f32 0.0, %v163
    %v165 = vpop.f32.mrb[0].mxu0
    %166 = vmatprep.mubr.f32.mxu0 0.0
    %167 = vmatmul.mubr.f32.gmra.mrb[0].mxu0 %v89
    %v168 = vpop.f32.mrb[0].mxu0
    %v169 = vadd.f32 0.0, %v168
    %v170 = vpop.f32.mrb[0].mxu0
    %171 = vmatprep.mubr.f32.mxu0 0.0
    %172 = vmatmul.mubr.f32.gmra.mrb[0].mxu0 %v92
    %v173 = vpop.f32.mrb[0].mxu0
    %v174 = vadd.f32 0.0, %v173
    %v175 = vpop.f32.mrb[0].mxu0
    %176 = vmatprep.mubr.f32.mxu0 0.0
    %177 = vmatmul.mubr.f32.gmra.mrb[0].mxu0 %v95
    %v178 = vpop.f32.mrb[0].mxu0
    %v179 = vadd.f32 0.0, %v178
    %v180 = vpop.f32.mrb[0].mxu0
    %181 = vdwg.mxu0
    %v182 = vadd.f32 %v48, %v164
    %v183 = vadd.f32 %v49, %v169
    %v184 = vadd.f32 %v50, %v174
    %v185 = vadd.f32 %v51, %v179
    %186 = vst.msk [vmem:[#allocation5] sm:$0xff] %vm84, %v182
    %187 = vst.msk [vmem:[#allocation5 + $0x8] sm:$0xff] %vm84, %v183
    %188 = vst.msk [vmem:[#allocation5 + $0x10] sm:$0xff] %vm84, %v184
    %189 = vst.msk [vmem:[#allocation5 + $0x18] sm:$0xff] %vm84, %v185
    %v190 = vld [vmem:[#allocation6] sm:$0x1]
    %v191 = vsel %vm84, %v44, 0.0
    %v192 = vsel %vm84, %v45, 0.0
    %v193 = vadd.f32 %v191, %v192
    %v194 = vsel %vm84, %v46, 0.0
    %v195 = vadd.f32 %v193, %v194
    %v196 = vsel %vm84, %v47, 0.0
    %v197 = vadd.f32 %v195, %v196
    %v198 = vrot.slane %v197, 4
    %v199 = vadd.f32 %v197, %v198
    %v200 = vrot.slane %v199, 2
    %v201 = vadd.f32 %v199, %v200
    %v202 = vrot.slane %v201, 1
    %v203 = vadd.f32 %v201, %v202
    %v204 = vadd.f32 %v190, %v203
    %vm205 = vcmask 253952
    %206 = vst.msk [vmem:[#allocation6] sm:$0x1] %vm205, %v204
    // Predicated region
    $region14: #{tpu_custom_call.1} parent=1 // pred_check
      _
    $region15: #{tpu_custom_call.1} parent=1 // pred_check_branch
      %208 = sbr.rel (0) target = $region17
    $region16: #{tpu_custom_call.1} parent=1 // pred_region
      %s210 = ssub.s32 512, 512
      %211 = vsyncadd [#allocation4], %s210
      %s212 = sshll.u32 [#allocation5], 4
      %s213 = int_to_ptr.vmem [resolvable:$true] %s212
      %218 = dma.vmem_to_hbm [thread:$0]  %s213, 512, %s1, [#allocation4], 128, 128, 8
    $region17: #{tpu_custom_call.1} parent=1 // pred_fallthru
      _
    // Predicated region
    $region18: #{tpu_custom_call.1} parent=1 // pred_check
      _
    $region19: #{tpu_custom_call.1} parent=1 // pred_check_branch
      %220 = sbr.rel (0) target = $region21
    $region20: #{tpu_custom_call.1} parent=1 // pred_region
      %s221 = sadd.s32 0, 0
      %s223 = ssub.s32 16, 16
      %224 = vsyncadd [#allocation7], %s223
      %s225 = smul.addr %s221, 16
      %s226 = scalar_lea.hbm %s2, %s225
      %s228 = sshll.u32 [#allocation6], 4
      %s229 = int_to_ptr.vmem [resolvable:$true] %s228
      %231 = dma.vmem_to_hbm [thread:$0]  %s229, 16, %s226, [#allocation7]
    $region21: #{tpu_custom_call.1} parent=1 // pred_fallthru
      _
    // Predicated region
    $region22: #{tpu_custom_call.1} parent=1 // pred_check
      _
    $region23: #{tpu_custom_call.1} parent=1 // pred_check_branch
      %233 = sbr.rel (0) target = $region25
    $region24: #{tpu_custom_call.1} parent=1 // pred_region
      %234 = dma.done [#allocation4], 512
    $region25: #{tpu_custom_call.1} parent=1 // pred_fallthru
      _
    // Predicated region
    $region26: #{tpu_custom_call.1} parent=1 // pred_check
      _
    $region27: #{tpu_custom_call.1} parent=1 // pred_check_branch
      %236 = sbr.rel (0) target = $region29
    $region28: #{tpu_custom_call.1} parent=1 // pred_region
      %237 = dma.done [#allocation7], 16
    $region29: #{tpu_custom_call.1} parent=1 // pred_fallthru
      _
    %238 = vsyncpa [#allocation3], 1
    %239 = vsyncpa [#allocation4], 1
    %240 = vsyncpa [#allocation7], 1

</llo_original>
